<compile_context>
chip_gen: v7x
topology: tpu7x:2x2x1
jax: 0.10.0
libtpu: 0.0.40
codegen_flags: <defaults>
</compile_context>

<pallas_src>
import functools

import jax
import jax.numpy as jnp
from jax.experimental import pallas as pl
from jax.experimental.pallas import tpu as pltpu


DIM = 128        # self.dim == d
H_NUM = 32       # hidden width h_num
NZ = 10          # latent dim self.Nz


def _round_up(n, m):
    return ((n + m - 1) // m) * m


def _vae_kernel(x_ref, eps_ref,
                w1_ref, w2_ref, w3_ref, w4_ref, b_ref,
                mu_ref, log_sigma_ref, enc_ref):
    mxu_dt = w1_ref.dtype                      # MXU-input / store dtype (io_dtype)

    # Packed resident biases (f32): rows = [b1 | b2 | b3 | b4], lane-padded to 256.
    b1 = b_ref[0:1, :H_NUM]                    # (1, 32)
    b2 = b_ref[1:2, :2 * NZ]                   # (1, 20)
    b3 = b_ref[2:3, :H_NUM]                    # (1, 32)
    b4 = b_ref[3:4, :]                         # (1, 256)

    # h = tanh(fc1(x)) : MXU in io dtype, f32 accumulate, tanh in f32.
    x = x_ref[...].astype(mxu_dt)                                    # (TB, DIM)
    h = jnp.tanh(jnp.dot(x, w1_ref[...],
                         preferred_element_type=jnp.float32) + b1)   # (TB, H) f32

    # Fused encoder heads: one (H, 2*NZ) matmul -> [mu_z | log_sigma_z].
    enc = jnp.dot(h.astype(mxu_dt), w2_ref[...],
                  preferred_element_type=jnp.float32) + b2           # (TB, 20) f32
    mu_z = enc[:, :NZ]
    log_sigma_z = enc[:, NZ:]

    # Reparameterization in f32: z = mu_z + exp(log_sigma_z) * eps
    z = mu_z + jnp.exp(log_sigma_z) * eps_ref[...].astype(jnp.float32)

    # h2 = tanh(fc3(z))
    h2 = jnp.tanh(jnp.dot(z.astype(mxu_dt), w3_ref[...],
                          preferred_element_type=jnp.float32) + b3)  # (TB, H) f32

    # Fused decoder: one (H, 2*DIM) matmul -> [mu_pre | log_sigma] (TB, 256);
    # split in-register at the 128-lane boundary, two lane-dense unmasked stores.
    dec = jnp.dot(h2.astype(mxu_dt), w4_ref[...],
                  preferred_element_type=jnp.float32) + b4           # (TB, 256) f32
    mu_ref[...] = jax.nn.sigmoid(dec[:, :DIM]).astype(mu_ref.dtype)  # scaled_mean
    log_sigma_ref[...] = dec[:, DIM:].astype(log_sigma_ref.dtype)
    enc_ref[...] = enc.astype(enc_ref.dtype)


@functools.partial(jax.jit, static_argnames=("tb", "io_dtype"))
def vae_forward(x, eps, params, *, tb=4096, io_dtype=jnp.bfloat16):
    """VAE forward pass (single Pallas kernel).

    x:   anything flattening to (-1, DIM)
    eps: gaussian noise flattening to (-1, NZ), one row per flattened row of x
         (mirrors torch.randn_like(mu_z); supplied externally for determinism).
    Returns (mu, mu_z, log_sigma, log_sigma_z) exactly like the PyTorch module.

    tb:       requested batch tile per grid step.  Kernel is HBM-bound, so use
              big tiles (2048-8192); it is auto-capped so the grid has >=2
              steps when the batch allows it (v7x megacore) and so the working
              set fits scoped VMEM.
    io_dtype: weight / activation-at-MXU / output dtype.  bf16 (default) is the
              main bandwidth lever on v6e/v7x; pass x/eps already in bf16 to
              also get the input-side savings (they are never cast in the
              wrapper, only inside the kernel).
    """
    (w1, b1, w2m, b2m, w2s, b2s, w3, b3, w4m, b4m, w4s, b4s) = params

    x = x.reshape(-1, DIM)
    eps = eps.reshape(-1, NZ)
    B = x.shape[0]
    assert eps.shape[0] == B, "eps must have one (Nz,) row per flattened row of x"

    # ---- tile-size selection -------------------------------------------------
    tb = _round_up(max(16, int(tb)), 16)           # sublane-safe for f32 and bf16
    # keep >=2 grid steps when possible so both v7x TensorCores get work
    if B > 16:
        tb = min(tb, _round_up(pl.cdiv(B, 2), 16))
    else:
        tb = min(tb, 16)
    # VMEM cap: every streamed block is lane-padded to 128 and double-buffered
    xb = jnp.dtype(x.dtype).itemsize
    eb = jnp.dtype(eps.dtype).itemsize
    ob = jnp.dtype(io_dtype).itemsize
    bytes_per_row = 2 * 128 * (xb + eb + 3 * ob)
    tb = min(tb, max(16, ((40 << 20) // bytes_per_row) // 16 * 16))
    vmem_limit = int(min(max(tb * bytes_per_row + (4 << 20), 32 << 20), 48 << 20))

    # ---- pack params (tiny, one-off) -----------------------------------------
    cast_w = lambda w: w.astype(io_dtype)
    w1c = cast_w(w1)                                                  # (128, 32)
    w2c = jnp.concatenate([cast_w(w2m), cast_w(w2s)], axis=1)         # (32, 20)
    w3c = cast_w(w3)                                                  # (10, 32)
    w4c = jnp.concatenate([cast_w(w4m), cast_w(w4s)], axis=1)         # (32, 256)

    def _pad_bias(b):
        b = b.reshape(1, -1).astype(jnp.float32)
        return jnp.pad(b, ((0, 0), (0, 2 * DIM - b.shape[1])))

    b_packed = jnp.concatenate([
        _pad_bias(b1),
        _pad_bias(jnp.concatenate([b2m, b2s], axis=1)),
        _pad_bias(b3),
        _pad_bias(jnp.concatenate([b4m, b4s], axis=1)),
    ], axis=0)                                                        # (4, 256) f32

    def full_spec(a):
        # whole-array resident block for weights / biases
        return pl.BlockSpec(a.shape, lambda i: (0, 0))

    in_specs = [
        pl.BlockSpec((tb, DIM), lambda i: (i, 0)),      # x
        pl.BlockSpec((tb, NZ), lambda i: (i, 0)),       # eps
        full_spec(w1c), full_spec(w2c), full_spec(w3c), full_spec(w4c),
        full_spec(b_packed),
    ]
    out_specs = (
        pl.BlockSpec((tb, DIM), lambda i: (i, 0)),      # mu          (lane-dense)
        pl.BlockSpec((tb, DIM), lambda i: (i, 0)),      # log_sigma   (lane-dense)
        pl.BlockSpec((tb, 2 * NZ), lambda i: (i, 0)),   # [mu_z | log_sigma_z]
    )
    out_shape = (
        jax.ShapeDtypeStruct((B, DIM), io_dtype),
        jax.ShapeDtypeStruct((B, DIM), io_dtype),
        jax.ShapeDtypeStruct((B, 2 * NZ), io_dtype),
    )

    mu, log_sigma, enc = pl.pallas_call(
        _vae_kernel,
        out_shape=out_shape,
        grid=(pl.cdiv(B, tb),),                         # ragged last block OK
        in_specs=in_specs,
        out_specs=out_specs,
        compiler_params=pltpu.CompilerParams(
            dimension_semantics=("parallel",),
            vmem_limit_bytes=vmem_limit),
    )(x, eps, w1c, w2c, w3c, w4c, b_packed)

    # 20-lane-wide views; under an outer jit these fuse with the consumers.
    mu_z = enc[:, :NZ]
    log_sigma_z = enc[:, NZ:]
    return mu, mu_z, log_sigma, log_sigma_z


def init_params(key, d=DIM, h_num=H_NUM, nz=NZ):
    """Deterministic init mimicking PyTorch Linear default U(-1/sqrt(fan_in), +)."""
    def linear(key, fan_in, fan_out):
        kw, kb = jax.random.split(key)
        bound = 1.0 / jnp.sqrt(fan_in)
        # stored as (in, out) so kernel does x @ W + b
        w = jax.random.uniform(kw, (fan_in, fan_out), jnp.float32, -bound, bound)
        b = jax.random.uniform(kb, (1, fan_out), jnp.float32, -bound, bound)
        return w, b

    keys = jax.random.split(key, 6)
    w1, b1 = linear(keys[0], d, h_num)        # fc1
    w2m, b2m = linear(keys[1], h_num, nz)     # fc2_mu
    w2s, b2s = linear(keys[2], h_num, nz)     # fc2_sigma
    w3, b3 = linear(keys[3], nz, h_num)       # fc3
    w4m, b4m = linear(keys[4], h_num, d)      # fc4_mu
    w4s, b4s = linear(keys[5], h_num, d)      # fc4_sigma
    return (w1, b1, w2m, b2m, w2s, b2s, w3, b3, w4m, b4m, w4s, b4s)


def reference_forward(x, eps, params):
    """Plain-JAX reference matching the PyTorch forward semantics."""
    (w1, b1, w2m, b2m, w2s, b2s, w3, b3, w4m, b4m, w4s, b4s) = params
    x = x.reshape(-1, DIM)
    h = jnp.tanh(x @ w1 + b1)
    mu_z = h @ w2m + b2m
    log_sigma_z = h @ w2s + b2s
    z = mu_z + jnp.exp(log_sigma_z) * eps.reshape(-1, NZ)
    h2 = jnp.tanh(z @ w3 + b3)
    mu = jax.nn.sigmoid(h2 @ w4m + b4m)
    log_sigma = h2 @ w4s + b4s
    return mu, mu_z, log_sigma, log_sigma_z


# TODO(synk): eps could be generated in-kernel with pltpu.prng_seed/prng_random_bits
# (Box-Muller) to drop the eps HBM stream entirely; kept external so the kernel is
# deterministic and testable against the reference.

if __name__ == "__main__":
    key = jax.random.PRNGKey(0)
    kx, keps, kparams = jax.random.split(key, 3)

    B = 64
    x = jax.random.normal(kx, (B, DIM), jnp.float32)        # flattens to (-1, 128)
    eps = jax.random.normal(keps, (B, NZ), jnp.float32)     # torch.randn_like(mu_z)
    params = init_params(kparams)

    refs = reference_forward(x, eps, params)

    # f32 I/O, explicit small tile -> 2-step grid: strict semantic check.
    outs = jax.block_until_ready(vae_forward(x, eps, params, tb=32, io_dtype=jnp.float32))
    for o, r in zip(outs, refs):
        assert o.shape == r.shape and o.dtype == r.dtype
        assert float(jnp.max(jnp.abs(o - r))) < 1e-3

    # f32 I/O, default (large, auto-clamped) tile.
    outs = jax.block_until_ready(vae_forward(x, eps, params, io_dtype=jnp.float32))
    for o, r in zip(outs, refs):
        assert float(jnp.max(jnp.abs(o - r))) < 1e-3

    # Ragged batch (B not a multiple of the tile): exercises the cdiv-grid path,
    # padded rows are dropped by Pallas so results for valid rows must match.
    Br = 50
    refs_r = reference_forward(x[:Br], eps[:Br], params)
    outs_r = jax.block_until_ready(
        vae_forward(x[:Br], eps[:Br], params, io_dtype=jnp.float32))
    for o, r in zip(outs_r, refs_r):
        assert o.shape == r.shape
        assert float(jnp.max(jnp.abs(o - r))) < 1e-3

    # bf16 path (default io_dtype; inputs already bf16 as recommended for v6e/v7x).
    # Compare against a reference run on bf16-rounded inputs/params; remaining
    # diff is in-kernel bf16 rounding at the MXU inputs and stores.
    to_bf = lambda a: a.astype(jnp.bfloat16).astype(jnp.float32)
    refs_bf = reference_forward(to_bf(x), to_bf(eps),
                                jax.tree_util.tree_map(to_bf, params))
    outs_bf = jax.block_until_ready(
        vae_forward(x.astype(jnp.bfloat16), eps.astype(jnp.bfloat16), params, tb=32))
    for o, r in zip(outs_bf, refs_bf):
        assert o.shape == r.shape
        assert float(jnp.max(jnp.abs(o.astype(jnp.float32) - r))) < 1e-1

    print("KERNEL_OK")
</pallas_src>

<mosaic_0001>
module attributes {stable_mosaic.version = 11 : i64} {
  func.func @_vae_kernel(%arg0: i32, %arg1: memref<32x128xf32, #tpu.memory_space<vmem>>, %arg2: memref<32x10xf32, #tpu.memory_space<vmem>>, %arg3: memref<128x32xf32, #tpu.memory_space<vmem>>, %arg4: memref<32x20xf32, #tpu.memory_space<vmem>>, %arg5: memref<10x32xf32, #tpu.memory_space<vmem>>, %arg6: memref<32x256xf32, #tpu.memory_space<vmem>>, %arg7: memref<4x256xf32, #tpu.memory_space<vmem>>, %arg8: memref<32x128xf32, #tpu.memory_space<vmem>>, %arg9: memref<32x128xf32, #tpu.memory_space<vmem>>, %arg10: memref<32x20xf32, #tpu.memory_space<vmem>>) attributes {dimension_semantics = [#tpu.dimension_semantics<parallel>], iteration_bounds = array<i64: 2>, scalar_prefetch = 0 : i64, scratch_operands = 0 : i64, tpu.core_type = #tpu.core_type<tc>, window_params = [{transform_indices = @transform_0, window_bounds = array<i64: 32, 128>}, {transform_indices = @transform_1, window_bounds = array<i64: 32, 10>}, {pipeline_mode = #tpu.pipeline_mode<synchronous>, transform_indices = @transform_2, window_bounds = array<i64: 128, 32>}, {pipeline_mode = #tpu.pipeline_mode<synchronous>, transform_indices = @transform_3, window_bounds = array<i64: 32, 20>}, {pipeline_mode = #tpu.pipeline_mode<synchronous>, transform_indices = @transform_4, window_bounds = array<i64: 10, 32>}, {pipeline_mode = #tpu.pipeline_mode<synchronous>, transform_indices = @transform_5, window_bounds = array<i64: 32, 256>}, {pipeline_mode = #tpu.pipeline_mode<synchronous>, transform_indices = @transform_6, window_bounds = array<i64: 4, 256>}, {transform_indices = @transform_7, window_bounds = array<i64: 32, 128>}, {transform_indices = @transform_8, window_bounds = array<i64: 32, 128>}, {transform_indices = @transform_9, window_bounds = array<i64: 32, 20>}]} {
    %c0 = arith.constant 0 : index
    %c0_0 = arith.constant 0 : index
    %0 = vector.load %arg7[%c0, %c0_0] : memref<4x256xf32, #tpu.memory_space<vmem>>, vector<1x32xf32>
    %c1 = arith.constant 1 : index
    %c0_1 = arith.constant 0 : index
    %1 = vector.load %arg7[%c1, %c0_1] : memref<4x256xf32, #tpu.memory_space<vmem>>, vector<1x20xf32>
    %c2 = arith.constant 2 : index
    %c0_2 = arith.constant 0 : index
    %2 = vector.load %arg7[%c2, %c0_2] : memref<4x256xf32, #tpu.memory_space<vmem>>, vector<1x32xf32>
    %c3 = arith.constant 3 : index
    %c0_3 = arith.constant 0 : index
    %3 = vector.load %arg7[%c3, %c0_3] : memref<4x256xf32, #tpu.memory_space<vmem>>, vector<1x256xf32>
    %c0_4 = arith.constant 0 : index
    %c0_5 = arith.constant 0 : index
    %4 = vector.load %arg1[%c0_4, %c0_5] : memref<32x128xf32, #tpu.memory_space<vmem>>, vector<32x128xf32>
    %c0_6 = arith.constant 0 : index
    %c0_7 = arith.constant 0 : index
    %5 = vector.load %arg3[%c0_6, %c0_7] : memref<128x32xf32, #tpu.memory_space<vmem>>, vector<128x32xf32>
    %cst = arith.constant dense<0.000000e+00> : vector<32x32xf32>
    %6 = tpu.matmul %4, %5, %cst {dimension_numbers = #tpu.dot_dimension_numbers<[1], [0], [0], [1], [0, 0, 1, 1], [], []>} : vector<32x128xf32>, vector<128x32xf32>, vector<32x32xf32> -> vector<32x32xf32>
    %7 = vector.broadcast %0 : vector<1x32xf32> to vector<32x32xf32>
    %8 = arith.addf %6, %7 : vector<32x32xf32>
    %9 = math.tanh %8 : vector<32x32xf32>
    %c0_8 = arith.constant 0 : index
    %c0_9 = arith.constant 0 : index
    %10 = vector.load %arg4[%c0_8, %c0_9] : memref<32x20xf32, #tpu.memory_space<vmem>>, vector<32x20xf32>
    %cst_10 = arith.constant dense<0.000000e+00> : vector<32x20xf32>
    %11 = tpu.matmul %9, %10, %cst_10 {dimension_numbers = #tpu.dot_dimension_numbers<[1], [0], [0], [1], [0, 0, 1, 1], [], []>} : vector<32x32xf32>, vector<32x20xf32>, vector<32x20xf32> -> vector<32x20xf32>
    %12 = vector.broadcast %1 : vector<1x20xf32> to vector<32x20xf32>
    %13 = arith.addf %11, %12 : vector<32x20xf32>
    %14 = vector.extract_strided_slice %13 {offsets = [0, 0], sizes = [32, 10], strides = [1, 1]} : vector<32x20xf32> to vector<32x10xf32>
    %15 = vector.extract_strided_slice %13 {offsets = [0, 10], sizes = [32, 10], strides = [1, 1]} : vector<32x20xf32> to vector<32x10xf32>
    %16 = math.exp %15 : vector<32x10xf32>
    %c0_11 = arith.constant 0 : index
    %c0_12 = arith.constant 0 : index
    %17 = vector.load %arg2[%c0_11, %c0_12] : memref<32x10xf32, #tpu.memory_space<vmem>>, vector<32x10xf32>
    %18 = arith.mulf %16, %17 : vector<32x10xf32>
    %19 = arith.addf %14, %18 : vector<32x10xf32>
    %c0_13 = arith.constant 0 : index
    %c0_14 = arith.constant 0 : index
    %20 = vector.load %arg5[%c0_13, %c0_14] : memref<10x32xf32, #tpu.memory_space<vmem>>, vector<10x32xf32>
    %cst_15 = arith.constant dense<0.000000e+00> : vector<32x32xf32>
    %21 = tpu.matmul %19, %20, %cst_15 {dimension_numbers = #tpu.dot_dimension_numbers<[1], [0], [0], [1], [0, 0, 1, 1], [], []>} : vector<32x10xf32>, vector<10x32xf32>, vector<32x32xf32> -> vector<32x32xf32>
    %22 = vector.broadcast %2 : vector<1x32xf32> to vector<32x32xf32>
    %23 = arith.addf %21, %22 : vector<32x32xf32>
    %24 = math.tanh %23 : vector<32x32xf32>
    %c0_16 = arith.constant 0 : index
    %c0_17 = arith.constant 0 : index
    %25 = vector.load %arg6[%c0_16, %c0_17] : memref<32x256xf32, #tpu.memory_space<vmem>>, vector<32x256xf32>
    %cst_18 = arith.constant dense<0.000000e+00> : vector<32x256xf32>
    %26 = tpu.matmul %24, %25, %cst_18 {dimension_numbers = #tpu.dot_dimension_numbers<[1], [0], [0], [1], [0, 0, 1, 1], [], []>} : vector<32x32xf32>, vector<32x256xf32>, vector<32x256xf32> -> vector<32x256xf32>
    %27 = vector.broadcast %3 : vector<1x256xf32> to vector<32x256xf32>
    %28 = arith.addf %26, %27 : vector<32x256xf32>
    %29 = vector.extract_strided_slice %28 {offsets = [0, 0], sizes = [32, 128], strides = [1, 1]} : vector<32x256xf32> to vector<32x128xf32>
    %30 = arith.negf %29 : vector<32x128xf32>
    %31 = math.exp %30 : vector<32x128xf32>
    %cst_19 = arith.constant 1.000000e+00 : f32
    %32 = vector.broadcast %cst_19 : f32 to vector<32x128xf32>
    %33 = arith.addf %32, %31 : vector<32x128xf32>
    %34 = arith.divf %32, %33 : vector<32x128xf32>
    %c0_20 = arith.constant 0 : index
    %c0_21 = arith.constant 0 : index
    %35 = vector.load %arg8[%c0_20, %c0_21] : memref<32x128xf32, #tpu.memory_space<vmem>>, vector<32x128xf32>
    tpu.vector_store %arg8[%c0_20, %c0_21], %34 {strides = array<i32>} : memref<32x128xf32, #tpu.memory_space<vmem>>, vector<32x128xf32>,
    %36 = vector.extract_strided_slice %28 {offsets = [0, 128], sizes = [32, 128], strides = [1, 1]} : vector<32x256xf32> to vector<32x128xf32>
    %c0_22 = arith.constant 0 : index
    %c0_23 = arith.constant 0 : index
    %37 = vector.load %arg9[%c0_22, %c0_23] : memref<32x128xf32, #tpu.memory_space<vmem>>, vector<32x128xf32>
    tpu.vector_store %arg9[%c0_22, %c0_23], %36 {strides = array<i32>} : memref<32x128xf32, #tpu.memory_space<vmem>>, vector<32x128xf32>,
    %c0_24 = arith.constant 0 : index
    %c0_25 = arith.constant 0 : index
    %38 = vector.load %arg10[%c0_24, %c0_25] : memref<32x20xf32, #tpu.memory_space<vmem>>, vector<32x20xf32>
    tpu.vector_store %arg10[%c0_24, %c0_25], %13 {strides = array<i32>} : memref<32x20xf32, #tpu.memory_space<vmem>>, vector<32x20xf32>,
    return
  }
  func.func @transform_0(%arg0: i32) -> (i32, i32) {
    %c0_i32 = arith.constant 0 : i32
    %c0_i32_0 = arith.constant 0 : i32
    return %arg0, %c0_i32 : i32, i32
  }
  func.func @transform_1(%arg0: i32) -> (i32, i32) {
    %c0_i32 = arith.constant 0 : i32
    %c0_i32_0 = arith.constant 0 : i32
    return %arg0, %c0_i32 : i32, i32
  }
  func.func @transform_2(%arg0: i32) -> (i32, i32) {
    %c0_i32 = arith.constant 0 : i32
    %c0_i32_0 = arith.constant 0 : i32
    %c0_i32_1 = arith.constant 0 : i32
    return %c0_i32, %c0_i32_0 : i32, i32
  }
  func.func @transform_3(%arg0: i32) -> (i32, i32) {
    %c0_i32 = arith.constant 0 : i32
    %c0_i32_0 = arith.constant 0 : i32
    %c0_i32_1 = arith.constant 0 : i32
    return %c0_i32, %c0_i32_0 : i32, i32
  }
  func.func @transform_4(%arg0: i32) -> (i32, i32) {
    %c0_i32 = arith.constant 0 : i32
    %c0_i32_0 = arith.constant 0 : i32
    %c0_i32_1 = arith.constant 0 : i32
    return %c0_i32, %c0_i32_0 : i32, i32
  }
  func.func @transform_5(%arg0: i32) -> (i32, i32) {
    %c0_i32 = arith.constant 0 : i32
    %c0_i32_0 = arith.constant 0 : i32
    %c0_i32_1 = arith.constant 0 : i32
    return %c0_i32, %c0_i32_0 : i32, i32
  }
  func.func @transform_6(%arg0: i32) -> (i32, i32) {
    %c0_i32 = arith.constant 0 : i32
    %c0_i32_0 = arith.constant 0 : i32
    %c0_i32_1 = arith.constant 0 : i32
    return %c0_i32, %c0_i32_0 : i32, i32
  }
  func.func @transform_7(%arg0: i32) -> (i32, i32) {
    %c0_i32 = arith.constant 0 : i32
    %c0_i32_0 = arith.constant 0 : i32
    return %arg0, %c0_i32 : i32, i32
  }
  func.func @transform_8(%arg0: i32) -> (i32, i32) {
    %c0_i32 = arith.constant 0 : i32
    %c0_i32_0 = arith.constant 0 : i32
    return %arg0, %c0_i32 : i32, i32
  }
  func.func @transform_9(%arg0: i32) -> (i32, i32) {
    %c0_i32 = arith.constant 0 : i32
    %c0_i32_0 = arith.constant 0 : i32
    return %arg0, %c0_i32 : i32, i32
  }
}

</mosaic_0001>

<llo_original>
// kernel: vae_forward.1
$region0: #{vae_forward.1}
  #allocation0 [shape = 'u32[]', space=smem, size = 0x4, offset = 0x4, fixed_abs, tag = 'smem constant byte address 0x4 - core index']
  #allocation1 [shape = 'u32[144,128]{1,0:T(1,128)}', space=vmem, size = 0x12000, scoped, tag = 'internal scratch']
  %s0 = inlined_call_operand.vmem [shape: f32[64,128], index: 0, kind: input, shape index: {}]
  %s1 = inlined_call_operand.vmem [shape: f32[64,10], index: 1, kind: input, shape index: {}]
  %s2 = inlined_call_operand.vmem [shape: f32[128,32], index: 2, kind: input, shape index: {}]
  %s3 = inlined_call_operand.vmem [shape: f32[32,20], index: 3, kind: input, shape index: {}]
  %s4 = inlined_call_operand.vmem [shape: f32[10,32], index: 4, kind: input, shape index: {}]
  %s5 = inlined_call_operand.vmem [shape: f32[32,256], index: 5, kind: input, shape index: {}]
  %s6 = inlined_call_operand.vmem [shape: f32[4,256], index: 6, kind: input, shape index: {}]
  %s7 = inlined_call_operand.hbm [shape: f32[64,128], index: 7, kind: output, shape index: {0}]
  %s8 = inlined_call_operand.hbm [shape: f32[64,128], index: 8, kind: output, shape index: {1}]
  %s9 = inlined_call_operand.vmem [shape: f32[64,20], index: 9, kind: output, shape index: {2}]
  %10 = xla_tuple %s7, %s8, %s9
  %s11 = sld [smem:[#allocation0]]
  $region77: #{vae_forward.1} parent=0
    _
  %s13 = ssub.s32 1, %s11
  %s14 = scalar_select 0, %s13, %s11
  $region1: #{vae_forward.1} parent=0
    #allocation2 [shape = 'u8[32768]{0}', space=vmem, size = 0x8000, scoped, tag = 'output window, operand 0']
    #allocation3 [shape = 's32[2]{0}', space=sflag, size = 0x8, scoped, tag = 'scoped memory for vae_forward.1']
    #allocation4 [shape = 'u8[32768]{0}', space=vmem, size = 0x8000, scoped, tag = 'output window, operand 1']
    #allocation5 [shape = 's32[2]{0}', space=sflag, size = 0x8, scoped, tag = 'scoped memory for vae_forward.1']
    %15 = vsyncpa [#allocation3], 0
    %s16 = scalar_lea.sflag [#allocation3], 1
    %17 = vsyncpa %s16, 0
    %18 = vsyncpa [#allocation5], 0
    %s19 = scalar_lea.sflag [#allocation5], 1
    %20 = vsyncpa %s19, 0
    loop: start=0, step=1, limit=4
    $region2: #{vae_forward.1} parent=1 // loop_pre_header
      _
    $region3: #{vae_forward.1} parent=1 // loop_header
      %s22 = sphi 0, %s26
      %p23 = scmp.ge.s32.totalorder %s22, 4
      %s32 = sphi 0, %s34
      %s35 = sphi 0, %s32
      %s36 = sphi 0, %s35
      %s52 = sphi 0, %s36
      %s58 = sphi 0, %s60
      %s61 = sphi 0, %s58
      %s62 = sphi 0, %s61
      %s78 = sphi 0, %s62
      %s82 = sphi 0, %s82
      %s84 = sphi 0, %s82
      %s85 = sphi 0, %s84
      %s99 = sphi 0, %s85
      %s103 = sphi 0, %s103
      %s105 = sphi 0, %s103
      %s106 = sphi 0, %s105
      %s120 = sphi 0, %s106
      %s124 = sphi 0, %s124
      %s126 = sphi 0, %s124
      %s127 = sphi 0, %s126
      %s141 = sphi 0, %s127
      %s145 = sphi 0, %s145
      %s147 = sphi 0, %s145
      %s148 = sphi 0, %s147
      %s162 = sphi 0, %s148
      %s166 = sphi 0, %s166
      %s168 = sphi 0, %s166
      %s169 = sphi 0, %s168
      %s183 = sphi 0, %s169
      %s189 = sphi 0, %s191
      %s192 = sphi 0, %s189
      %s193 = sphi 0, %s192
      %s209 = sphi 0, %s193
      %s215 = sphi 0, %s217
      %s218 = sphi 0, %s215
      %s219 = sphi 0, %s218
      %s235 = sphi 0, %s219
      %s241 = sphi 0, %s243
      %s244 = sphi 0, %s241
      %s245 = sphi 0, %s244
      %s261 = sphi 0, %s245
    $region4: #{vae_forward.1} parent=1 // loop_header_branch
      %25 = sbr.rel (%p23) target = $region8
    $region5: #{vae_forward.1} parent=1 // loop_body
      %s27 = ssub.s32 %s22, 1
      %s28 = ssub.s32 %s22, 2
      %s29 = sadd.s32 %s22, 1
      %s30 = ssub.s32 %s22, %s29
      %p31 = scmp.eq.s32.totalorder %s30, 0
      %s33 = sadd.s32 %s32, 1
      %s34 = scalar_select %p31, %s32, %s33
      %p37 = pneg %p31
      %p38 = scmp.eq.s32.totalorder %s22, 1
      %p39 = por %p37, %p38
      %p40 = scmp.ne.s32.totalorder %s32, %s35
      %p41 = scmp.eq.s32.totalorder %s22, 0
      %p42 = por %p40, %p41
      %p43 = scmp.ne.s32.totalorder %s32, %s35
      %p44 = scmp.eq.s32.totalorder %s27, 1
      %p45 = por %p43, %p44
      %p46 = scmp.ne.s32.totalorder %s35, %s36
      %p47 = scmp.eq.s32.totalorder %s27, 0
      %p48 = por %p46, %p47
      %p49 = scmp.ne.s32.totalorder %s35, %s36
      %p50 = scmp.eq.s32.totalorder %s28, 1
      %p51 = por %p49, %p50
      %p53 = scmp.ne.s32.totalorder %s36, %s52
      %p54 = scmp.eq.s32.totalorder %s28, 0
      %p55 = por %p53, %p54
      %s56 = ssub.s32 %s22, %s29
      %p57 = scmp.eq.s32.totalorder %s56, 0
      %s59 = sadd.s32 %s58, 1
      %s60 = scalar_select %p57, %s58, %s59
      %p63 = pneg %p57
      %p64 = scmp.eq.s32.totalorder %s22, 1
      %p65 = por %p63, %p64
      %p66 = scmp.ne.s32.totalorder %s58, %s61
      %p67 = scmp.eq.s32.totalorder %s22, 0
      %p68 = por %p66, %p67
      %p69 = scmp.ne.s32.totalorder %s58, %s61
      %p70 = scmp.eq.s32.totalorder %s27, 1
      %p71 = por %p69, %p70
      %p72 = scmp.ne.s32.totalorder %s61, %s62
      %p73 = scmp.eq.s32.totalorder %s27, 0
      %p74 = por %p72, %p73
      %p75 = scmp.ne.s32.totalorder %s61, %s62
      %p76 = scmp.eq.s32.totalorder %s28, 1
      %p77 = por %p75, %p76
      %p79 = scmp.ne.s32.totalorder %s62, %s78
      %p80 = scmp.eq.s32.totalorder %s28, 0
      %p81 = por %p79, %p80
      %s83 = sadd.s32 %s82, 1
      %p86 = scmp.eq.s32.totalorder %s22, 1
      %p87 = scmp.ne.s32.totalorder %s82, %s84
      %p88 = scmp.eq.s32.totalorder %s22, 0
      %p89 = por %p87, %p88
      %p90 = scmp.ne.s32.totalorder %s82, %s84
      %p91 = scmp.eq.s32.totalorder %s27, 1
      %p92 = por %p90, %p91
      %p93 = scmp.ne.s32.totalorder %s84, %s85
      %p94 = scmp.eq.s32.totalorder %s27, 0
      %p95 = por %p93, %p94
      %p96 = scmp.ne.s32.totalorder %s84, %s85
      %p97 = scmp.eq.s32.totalorder %s28, 1
      %p98 = por %p96, %p97
      %p100 = scmp.ne.s32.totalorder %s85, %s99
      %p101 = scmp.eq.s32.totalorder %s28, 0
      %p102 = por %p100, %p101
      %s104 = sadd.s32 %s103, 1
      %p107 = scmp.eq.s32.totalorder %s22, 1
      %p108 = scmp.ne.s32.totalorder %s103, %s105
      %p109 = scmp.eq.s32.totalorder %s22, 0
      %p110 = por %p108, %p109
      %p111 = scmp.ne.s32.totalorder %s103, %s105
      %p112 = scmp.eq.s32.totalorder %s27, 1
      %p113 = por %p111, %p112
      %p114 = scmp.ne.s32.totalorder %s105, %s106
      %p115 = scmp.eq.s32.totalorder %s27, 0
      %p116 = por %p114, %p115
      %p117 = scmp.ne.s32.totalorder %s105, %s106
      %p118 = scmp.eq.s32.totalorder %s28, 1
      %p119 = por %p117, %p118
      %p121 = scmp.ne.s32.totalorder %s106, %s120
      %p122 = scmp.eq.s32.totalorder %s28, 0
      %p123 = por %p121, %p122
      %s125 = sadd.s32 %s124, 1
      %p128 = scmp.eq.s32.totalorder %s22, 1
      %p129 = scmp.ne.s32.totalorder %s124, %s126
      %p130 = scmp.eq.s32.totalorder %s22, 0
      %p131 = por %p129, %p130
      %p132 = scmp.ne.s32.totalorder %s124, %s126
      %p133 = scmp.eq.s32.totalorder %s27, 1
      %p134 = por %p132, %p133
      %p135 = scmp.ne.s32.totalorder %s126, %s127
      %p136 = scmp.eq.s32.totalorder %s27, 0
      %p137 = por %p135, %p136
      %p138 = scmp.ne.s32.totalorder %s126, %s127
      %p139 = scmp.eq.s32.totalorder %s28, 1
      %p140 = por %p138, %p139
      %p142 = scmp.ne.s32.totalorder %s127, %s141
      %p143 = scmp.eq.s32.totalorder %s28, 0
      %p144 = por %p142, %p143
      %s146 = sadd.s32 %s145, 1
      %p149 = scmp.eq.s32.totalorder %s22, 1
      %p150 = scmp.ne.s32.totalorder %s145, %s147
      %p151 = scmp.eq.s32.totalorder %s22, 0
      %p152 = por %p150, %p151
      %p153 = scmp.ne.s32.totalorder %s145, %s147
      %p154 = scmp.eq.s32.totalorder %s27, 1
      %p155 = por %p153, %p154
      %p156 = scmp.ne.s32.totalorder %s147, %s148
      %p157 = scmp.eq.s32.totalorder %s27, 0
      %p158 = por %p156, %p157
      %p159 = scmp.ne.s32.totalorder %s147, %s148
      %p160 = scmp.eq.s32.totalorder %s28, 1
      %p161 = por %p159, %p160
      %p163 = scmp.ne.s32.totalorder %s148, %s162
      %p164 = scmp.eq.s32.totalorder %s28, 0
      %p165 = por %p163, %p164
      %s167 = sadd.s32 %s166, 1
      %p170 = scmp.eq.s32.totalorder %s22, 1
      %p171 = scmp.ne.s32.totalorder %s166, %s168
      %p172 = scmp.eq.s32.totalorder %s22, 0
      %p173 = por %p171, %p172
      %p174 = scmp.ne.s32.totalorder %s166, %s168
      %p175 = scmp.eq.s32.totalorder %s27, 1
      %p176 = por %p174, %p175
      %p177 = scmp.ne.s32.totalorder %s168, %s169
      %p178 = scmp.eq.s32.totalorder %s27, 0
      %p179 = por %p177, %p178
      %p180 = scmp.ne.s32.totalorder %s168, %s169
      %p181 = scmp.eq.s32.totalorder %s28, 1
      %p182 = por %p180, %p181
      %p184 = scmp.ne.s32.totalorder %s169, %s183
      %p185 = scmp.eq.s32.totalorder %s28, 0
      %p186 = por %p184, %p185
      %s187 = ssub.s32 %s22, %s29
      %p188 = scmp.eq.s32.totalorder %s187, 0
      %s190 = sadd.s32 %s189, 1
      %s191 = scalar_select %p188, %s189, %s190
      %p194 = pneg %p188
      %p195 = scmp.eq.s32.totalorder %s22, 1
      %p196 = por %p194, %p195
      %p197 = scmp.ne.s32.totalorder %s189, %s192
      %p198 = scmp.eq.s32.totalorder %s22, 0
      %p199 = por %p197, %p198
      %p200 = scmp.ne.s32.totalorder %s189, %s192
      %p201 = scmp.eq.s32.totalorder %s27, 1
      %p202 = por %p200, %p201
      %p203 = scmp.ne.s32.totalorder %s192, %s193
      %p204 = scmp.eq.s32.totalorder %s27, 0
      %p205 = por %p203, %p204
      %p206 = scmp.ne.s32.totalorder %s192, %s193
      %p207 = scmp.eq.s32.totalorder %s28, 1
      %p208 = por %p206, %p207
      %p210 = scmp.ne.s32.totalorder %s193, %s209
      %p211 = scmp.eq.s32.totalorder %s28, 0
      %p212 = por %p210, %p211
      %s213 = ssub.s32 %s22, %s29
      %p214 = scmp.eq.s32.totalorder %s213, 0
      %s216 = sadd.s32 %s215, 1
      %s217 = scalar_select %p214, %s215, %s216
      %p220 = pneg %p214
      %p221 = scmp.eq.s32.totalorder %s22, 1
      %p222 = por %p220, %p221
      %p223 = scmp.ne.s32.totalorder %s215, %s218
      %p224 = scmp.eq.s32.totalorder %s22, 0
      %p225 = por %p223, %p224
      %p226 = scmp.ne.s32.totalorder %s215, %s218
      %p227 = scmp.eq.s32.totalorder %s27, 1
      %p228 = por %p226, %p227
      %p229 = scmp.ne.s32.totalorder %s218, %s219
      %p230 = scmp.eq.s32.totalorder %s27, 0
      %p231 = por %p229, %p230
      %p232 = scmp.ne.s32.totalorder %s218, %s219
      %p233 = scmp.eq.s32.totalorder %s28, 1
      %p234 = por %p232, %p233
      %p236 = scmp.ne.s32.totalorder %s219, %s235
      %p237 = scmp.eq.s32.totalorder %s28, 0
      %p238 = por %p236, %p237
      %s239 = ssub.s32 %s22, %s29
      %p240 = scmp.eq.s32.totalorder %s239, 0
      %s242 = sadd.s32 %s241, 1
      %s243 = scalar_select %p240, %s241, %s242
      %p246 = pneg %p240
      %p247 = scmp.eq.s32.totalorder %s22, 1
      %p248 = por %p246, %p247
      %p249 = scmp.ne.s32.totalorder %s241, %s244
      %p250 = scmp.eq.s32.totalorder %s22, 0
      %p251 = por %p249, %p250
      %p252 = scmp.ne.s32.totalorder %s241, %s244
      %p253 = scmp.eq.s32.totalorder %s27, 1
      %p254 = por %p252, %p253
      %p255 = scmp.ne.s32.totalorder %s244, %s245
      %p256 = scmp.eq.s32.totalorder %s27, 0
      %p257 = por %p255, %p256
      %p258 = scmp.ne.s32.totalorder %s244, %s245
      %p259 = scmp.eq.s32.totalorder %s28, 1
      %p260 = por %p258, %p259
      %p262 = scmp.ne.s32.totalorder %s245, %s261
      %p263 = scmp.eq.s32.totalorder %s28, 0
      %p264 = por %p262, %p263
      %p265 = scmp.le.s32.totalorder 1, %s22
      %p266 = scmp.lt.s32.totalorder %s22, 3
      %p267 = pnand %p265, %p266
      %p268 = pneg %p267
      // Predicated region
      $region9: #{vae_forward.1} parent=5 // pred_check
        _
      $region10: #{vae_forward.1} parent=5 // pred_check_branch
        %270 = sbr.rel (%p267) target = $region12
      $region11: #{vae_forward.1} parent=5 // pred_region
        %s271 = ssub.s32 %s22, 1
        // Predicated region
        $region13: #{vae_forward.1} parent=11 // pred_check
          %p272 = pneg %p95
        $region14: #{vae_forward.1} parent=11 // pred_check_branch
          %274 = sbr.rel (%p272) target = $region16
        $region15: #{vae_forward.1} parent=11 // pred_region
          _
        $region16: #{vae_forward.1} parent=11 // pred_fallthru
          _
        // Predicated region
        $region17: #{vae_forward.1} parent=11 // pred_check
          %p275 = pneg %p116
        $region18: #{vae_forward.1} parent=11 // pred_check_branch
          %277 = sbr.rel (%p275) target = $region20
        $region19: #{vae_forward.1} parent=11 // pred_region
          _
        $region20: #{vae_forward.1} parent=11 // pred_fallthru
          _
        // Predicated region
        $region21: #{vae_forward.1} parent=11 // pred_check
          %p278 = pneg %p137
        $region22: #{vae_forward.1} parent=11 // pred_check_branch
          %280 = sbr.rel (%p278) target = $region24
        $region23: #{vae_forward.1} parent=11 // pred_region
          _
        $region24: #{vae_forward.1} parent=11 // pred_fallthru
          _
        // Predicated region
        $region25: #{vae_forward.1} parent=11 // pred_check
          %p281 = pneg %p158
        $region26: #{vae_forward.1} parent=11 // pred_check_branch
          %283 = sbr.rel (%p281) target = $region28
        $region27: #{vae_forward.1} parent=11 // pred_region
          _
        $region28: #{vae_forward.1} parent=11 // pred_fallthru
          _
        // Predicated region
        $region29: #{vae_forward.1} parent=11 // pred_check
          %p284 = pneg %p179
        $region30: #{vae_forward.1} parent=11 // pred_check_branch
          %286 = sbr.rel (%p284) target = $region32
        $region31: #{vae_forward.1} parent=11 // pred_region
          _
        $region32: #{vae_forward.1} parent=11 // pred_fallthru
          _
      $region12: #{vae_forward.1} parent=5 // pred_fallthru
        _
      %p287 = scmp.lt.s32.totalorder %s22, 2
      // Predicated region
      $region33: #{vae_forward.1} parent=5 // pred_check
        %p288 = pneg %p287
      $region34: #{vae_forward.1} parent=5 // pred_check_branch
        %290 = sbr.rel (%p288) target = $region36
      $region35: #{vae_forward.1} parent=5 // pred_region
        // Predicated region
        $region37: #{vae_forward.1} parent=35 // pred_check
          %p291 = pneg %p42
        $region38: #{vae_forward.1} parent=35 // pred_check_branch
          %293 = sbr.rel (%p291) target = $region40
        $region39: #{vae_forward.1} parent=35 // pred_region
          %s294 = smul.u32 4, %s22
          %p295 = scmp.lt.s32.totalorder %s294, 7
          %s296 = scalar_select %p295, %s294, 7
          %s297 = smul.addr %s296, 8
          %s298 = scalar_lea.vmem %s0, %s297
          %s299 = smul.u32 4, %s22
        $region40: #{vae_forward.1} parent=35 // pred_fallthru
          _
        // Predicated region
        $region41: #{vae_forward.1} parent=35 // pred_check
          %p300 = pneg %p68
        $region42: #{vae_forward.1} parent=35 // pred_check_branch
          %302 = sbr.rel (%p300) target = $region44
        $region43: #{vae_forward.1} parent=35 // pred_region
          %s303 = smul.u32 4, %s22
          %p304 = scmp.lt.s32.totalorder %s303, 7
          %s305 = scalar_select %p304, %s303, 7
          %s306 = smul.addr %s305, 8
          %s307 = scalar_lea.vmem %s1, %s306
          %s308 = smul.u32 4, %s22
        $region44: #{vae_forward.1} parent=35 // pred_fallthru
          _
      $region36: #{vae_forward.1} parent=5 // pred_fallthru
        _
      %p309 = scmp.le.s32.totalorder 1, %s22
      %p310 = scmp.lt.s32.totalorder %s22, 3
      %p311 = pnand %p309, %p310
      %p312 = pneg %p311
      // Predicated region
      $region45: #{vae_forward.1} parent=5 // pred_check
        _
      $region46: #{vae_forward.1} parent=5 // pred_check_branch
        %314 = sbr.rel (%p311) target = $region48
      $region47: #{vae_forward.1} parent=5 // pred_region
        %s315 = ssub.s32 %s22, 1
        %s316 = smul.u32 4, %s27
        %p317 = scmp.lt.s32.totalorder %s316, 7
        %s318 = scalar_select %p317, %s316, 7
        %s319 = smul.addr %s318, 8
        %s320 = scalar_lea.vmem %s0, %s319
        %p321 = pneg %p48
        %p322 = pneg %p45
        %s323 = smul.u32 4, %s27
        %p324 = scmp.lt.s32.totalorder %s323, 7
        %s325 = scalar_select %p324, %s323, 7
        %s326 = smul.addr %s325, 8
        %s327 = scalar_lea.vmem %s1, %s326
        %p328 = pneg %p74
        %p329 = pneg %p71
        %p330 = pneg %p95
        %p331 = pneg %p92
        %p332 = pneg %p116
        %p333 = pneg %p113
        %p334 = pneg %p137
        %p335 = pneg %p134
        %p336 = pneg %p158
        %p337 = pneg %p155
        %p338 = pneg %p179
        %p339 = pneg %p176
        %p340 = pneg %p205
        %p341 = pneg %p202
        %s342 = sand.u32 %s192, 1
        %s343 = scalar_lea.sflag [#allocation3], %s342
        %s344 = sand.u32 %s192, 1
        %s345 = smul.addr %s344, 32
        %s346 = scalar_lea.vmem [#allocation2], %s345
        %p347 = pneg %p231
        %p348 = pneg %p228
        %s349 = sand.u32 %s218, 1
        %s350 = scalar_lea.sflag [#allocation5], %s349
        %s351 = sand.u32 %s218, 1
        %s352 = smul.addr %s351, 32
        %s353 = scalar_lea.vmem [#allocation4], %s352
        %p354 = pneg %p257
        %p355 = pneg %p254
        %s356 = smul.u32 4, %s27
        %p357 = scmp.lt.s32.totalorder %s356, 7
        %s358 = scalar_select %p357, %s356, 7
        %s359 = smul.addr %s358, 8
        %s360 = scalar_lea.vmem %s9, %s359
        %s361 = smul.u32 4, %s27
        %p362 = scmp.lt.s32.totalorder %s361, 7
        %s363 = scalar_select %p362, %s361, 7
        %s364 = smul.addr %s363, 8
        %s365 = scalar_lea.vmem %s0, %s364
        %s366 = smul.u32 4, %s27
        %s367 = smul.u32 4, %s27
        %p368 = scmp.lt.s32.totalorder %s367, 7
        %s369 = scalar_select %p368, %s367, 7
        %s370 = smul.addr %s369, 8
        %s371 = scalar_lea.vmem %s1, %s370
        %s372 = smul.u32 4, %s27
        %s373 = smul.u32 4, %s27
        %s374 = smul.u32 4, %s27
        %s375 = smul.u32 4, %s27
        %p376 = scmp.lt.s32.totalorder %s375, 7
        %s377 = scalar_select %p376, %s375, 7
        %s378 = smul.addr %s377, 8
        %s379 = scalar_lea.vmem %s9, %s378
        %s380 = smul.u32 4, %s27
        %v381 = vld [vmem:[%s6] sm:$0x1]
        %v382 = vld [vmem:[%s6 + $0x1] sm:$0x1]
        %v383 = vld [vmem:[%s6 + $0x2] sm:$0x1]
        %s384 = scalar_lea.vmem %s6, 3
        %v385 = vld [vmem:[%s384] ss:$4 sm:$0x3]
        %v386 = vld [vmem:[%s365] sm:$0xff]
        %v387 = vld [vmem:[%s365 + $0x8] sm:$0xff]
        %v388 = vld [vmem:[%s365 + $0x10] sm:$0xff]
        %v389 = vld [vmem:[%s365 + $0x18] sm:$0xff]
        %v390 = vld [vmem:[%s2] sm:$0xff]
        %v391 = vld [vmem:[%s2 + $0x8] sm:$0xff]
        %v392 = vld [vmem:[%s2 + $0x10] sm:$0xff]
        %v393 = vld [vmem:[%s2 + $0x18] sm:$0xff]
        %v394 = vld [vmem:[%s2 + $0x20] sm:$0xff]
        %v395 = vld [vmem:[%s2 + $0x28] sm:$0xff]
        %v396 = vld [vmem:[%s2 + $0x30] sm:$0xff]
        %v397 = vld [vmem:[%s2 + $0x38] sm:$0xff]
        %v398 = vld [vmem:[%s2 + $0x40] sm:$0xff]
        %v399 = vld [vmem:[%s2 + $0x48] sm:$0xff]
        %v400 = vld [vmem:[%s2 + $0x50] sm:$0xff]
        %v401 = vld [vmem:[%s2 + $0x58] sm:$0xff]
        %v402 = vld [vmem:[%s2 + $0x60] sm:$0xff]
        %v403 = vld [vmem:[%s2 + $0x68] sm:$0xff]
        %v404 = vld [vmem:[%s2 + $0x70] sm:$0xff]
        %v405 = vld [vmem:[%s2 + $0x78] sm:$0xff]
        %v406 = vlaneseq
        %v407 = vshrl.u32 %v406, 7
        %v408 = vsub.s32 0, %v407
        %v409 = vrot.slane %v381, %v408
        %410 = vmatprep.subr.mxu0 0.0
        %411 = vmatpush1.msra.mxu0 %v390
        %412 = vmatprep.subr.mxu0 0.0
        %413 = vmatpush1.msra.mxu0 %v391
        %414 = vmatprep.subr.mxu0 0.0
        %415 = vmatpush1.msra.mxu0 %v392
        %416 = vmatprep.subr.mxu0 0.0
        %417 = vmatpush1.msra.mxu0 %v393
        %418 = vmatprep.subr.mxu0 0.0
        %419 = vmatpush1.msra.mxu0 %v394
        %420 = vmatprep.subr.mxu0 0.0
        %421 = vmatpush1.msra.mxu0 %v395
        %422 = vmatprep.subr.mxu0 0.0
        %423 = vmatpush1.msra.mxu0 %v396
        %424 = vmatprep.subr.mxu0 0.0
        %425 = vmatpush1.msra.mxu0 %v397
        %426 = vmatprep.subr.mxu0 0.0
        %427 = vmatpush1.msra.mxu0 %v398
        %428 = vmatprep.subr.mxu0 0.0
        %429 = vmatpush1.msra.mxu0 %v399
        %430 = vmatprep.subr.mxu0 0.0
        %431 = vmatpush1.msra.mxu0 %v400
        %432 = vmatprep.subr.mxu0 0.0
        %433 = vmatpush1.msra.mxu0 %v401
        %434 = vmatprep.subr.mxu0 0.0
        %435 = vmatpush1.msra.mxu0 %v402
        %436 = vmatprep.subr.mxu0 0.0
        %437 = vmatpush1.msra.mxu0 %v403
        %438 = vmatprep.subr.mxu0 0.0
        %439 = vmatpush1.msra.mxu0 %v404
        %440 = vmatprep.subr.mxu0 0.0
        %441 = vmatpush1.msra.mxu0 %v405
        %442 = vmatprep.subr.mxu0 0.0
        %443 = vmatpush1.msra.mxu0 0.0
        %444 = vmatprep.subr.mxu0 0.0
        %445 = vmatpush1.msra.mxu0 0.0
        %446 = vmatprep.subr.mxu0 0.0
        %447 = vmatpush1.msra.mxu0 0.0
        %448 = vmatprep.subr.mxu0 0.0
        %449 = vmatpush1.msra.mxu0 0.0
        %450 = vmatprep.subr.mxu0 0.0
        %451 = vmatpush1.msra.mxu0 0.0
        %452 = vmatprep.subr.mxu0 0.0
        %453 = vmatpush1.msra.mxu0 0.0
        %454 = vmatprep.subr.mxu0 0.0
        %455 = vmatpush1.msra.mxu0 0.0
        %456 = vmatprep.subr.mxu0 0.0
        %457 = vmatpush1.msra.mxu0 0.0
        %458 = vmatprep.subr.mxu0 0.0
        %459 = vmatpush1.msra.mxu0 0.0
        %460 = vmatprep.subr.mxu0 0.0
        %461 = vmatpush1.msra.mxu0 0.0
        %462 = vmatprep.subr.mxu0 0.0
        %463 = vmatpush1.msra.mxu0 0.0
        %464 = vmatprep.subr.mxu0 0.0
        %465 = vmatpush1.msra.mxu0 0.0
        %466 = vmatprep.subr.mxu0 0.0
        %467 = vmatpush1.msra.mxu0 0.0
        %468 = vmatprep.subr.mxu0 0.0
        %469 = vmatpush1.msra.mxu0 0.0
        %470 = vmatprep.subr.mxu0 0.0
        %471 = vmatpush1.msra.mxu0 0.0
        %472 = vmatprep.subr.mxu0 0.0
        %473 = vmatpush1.msra.mxu0 0.0
        %474 = vmatprep.mubr.f32.mxu0 0.0
        %475 = vmatmul.mubr.f32.gmra.mrb[0].mxu0 %v386
        %v476 = vpop.f32.mrb[0].mxu0
        %v477 = vadd.f32 %v409, %v476
        %v478 = vpop.f32.mrb[0].mxu0
        %479 = vmatprep.mubr.f32.mxu0 0.0
        %480 = vmatmul.mubr.f32.gmra.mrb[0].mxu0 %v387
        %v481 = vpop.f32.mrb[0].mxu0
        %v482 = vadd.f32 %v409, %v481
        %v483 = vpop.f32.mrb[0].mxu0
        %484 = vmatprep.mubr.f32.mxu0 0.0
        %485 = vmatmul.mubr.f32.gmra.mrb[0].mxu0 %v388
        %v486 = vpop.f32.mrb[0].mxu0
        %v487 = vadd.f32 %v409, %v486
        %v488 = vpop.f32.mrb[0].mxu0
        %489 = vmatprep.mubr.f32.mxu0 0.0
        %490 = vmatmul.mubr.f32.gmra.mrb[0].mxu0 %v389
        %v491 = vpop.f32.mrb[0].mxu0
        %v492 = vadd.f32 %v409, %v491
        %v493 = vpop.f32.mrb[0].mxu0
        %494 = vdwg.mxu0
        %v495 = vtanh.pop %v477
        %v496 = vtanh.pop %v482
        %v497 = vtanh.pop %v487
        %v498 = vtanh.pop %v492
        %v499 = vld [vmem:[%s3] sm:$0xff]
        %v500 = vld [vmem:[%s3 + $0x8] sm:$0xff]
        %v501 = vld [vmem:[%s3 + $0x10] sm:$0xff]
        %v502 = vld [vmem:[%s3 + $0x18] sm:$0xff]
        %v503 = vlaneseq
        %v504 = vshrl.u32 %v503, 7
        %v505 = vsub.s32 0, %v504
        %v506 = vrot.slane %v382, %v505
        %vm507 = vcmask 261120
        %v509 = vsel %vm507, %v495, 0
        %v512 = vsel %vm507, %v496, 0
        %v515 = vsel %vm507, %v497, 0
        %v518 = vsel %vm507, %v498, 0
        %520 = vmatprep.subr.mxu0 0.0
        %521 = vmatpush1.msra.mxu0 %v499
        %522 = vmatprep.subr.mxu0 0.0
        %523 = vmatpush1.msra.mxu0 %v500
        %524 = vmatprep.subr.mxu0 0.0
        %525 = vmatpush1.msra.mxu0 %v501
        %526 = vmatprep.subr.mxu0 0.0
        %527 = vmatpush1.msra.mxu0 %v502
        %528 = vmatprep.subr.mxu0 0.0
        %529 = vmatpush1.msra.mxu0 0.0
        %530 = vmatprep.subr.mxu0 0.0
        %531 = vmatpush1.msra.mxu0 0.0
        %532 = vmatprep.subr.mxu0 0.0
        %533 = vmatpush1.msra.mxu0 0.0
        %534 = vmatprep.subr.mxu0 0.0
        %535 = vmatpush1.msra.mxu0 0.0
        %536 = vmatprep.subr.mxu0 0.0
        %537 = vmatpush1.msra.mxu0 0.0
        %538 = vmatprep.subr.mxu0 0.0
        %539 = vmatpush1.msra.mxu0 0.0
        %540 = vmatprep.subr.mxu0 0.0
        %541 = vmatpush1.msra.mxu0 0.0
        %542 = vmatprep.subr.mxu0 0.0
        %543 = vmatpush1.msra.mxu0 0.0
        %544 = vmatprep.subr.mxu0 0.0
        %545 = vmatpush1.msra.mxu0 0.0
        %546 = vmatprep.subr.mxu0 0.0
        %547 = vmatpush1.msra.mxu0 0.0
        %548 = vmatprep.subr.mxu0 0.0
        %549 = vmatpush1.msra.mxu0 0.0
        %550 = vmatprep.subr.mxu0 0.0
        %551 = vmatpush1.msra.mxu0 0.0
        %552 = vmatprep.subr.mxu0 0.0
        %553 = vmatpush1.msra.mxu0 0.0
        %554 = vmatprep.subr.mxu0 0.0
        %555 = vmatpush1.msra.mxu0 0.0
        %556 = vmatprep.subr.mxu0 0.0
        %557 = vmatpush1.msra.mxu0 0.0
        %558 = vmatprep.subr.mxu0 0.0
        %559 = vmatpush1.msra.mxu0 0.0
        %560 = vmatprep.subr.mxu0 0.0
        %561 = vmatpush1.msra.mxu0 0.0
        %562 = vmatprep.subr.mxu0 0.0
        %563 = vmatpush1.msra.mxu0 0.0
        %564 = vmatprep.subr.mxu0 0.0
        %565 = vmatpush1.msra.mxu0 0.0
        %566 = vmatprep.subr.mxu0 0.0
        %567 = vmatpush1.msra.mxu0 0.0
        %568 = vmatprep.subr.mxu0 0.0
        %569 = vmatpush1.msra.mxu0 0.0
        %570 = vmatprep.subr.mxu0 0.0
        %571 = vmatpush1.msra.mxu0 0.0
        %572 = vmatprep.subr.mxu0 0.0
        %573 = vmatpush1.msra.mxu0 0.0
        %574 = vmatprep.subr.mxu0 0.0
        %575 = vmatpush1.msra.mxu0 0.0
        %576 = vmatprep.subr.mxu0 0.0
        %577 = vmatpush1.msra.mxu0 0.0
        %578 = vmatprep.subr.mxu0 0.0
        %579 = vmatpush1.msra.mxu0 0.0
        %580 = vmatprep.subr.mxu0 0.0
        %581 = vmatpush1.msra.mxu0 0.0
        %582 = vmatprep.subr.mxu0 0.0
        %583 = vmatpush1.msra.mxu0 0.0
        %584 = vmatprep.mubr.f32.mxu0 0.0
        %585 = vmatmul.mubr.f32.gmra.mrb[0].mxu0 %v509
        %v586 = vpop.f32.mrb[0].mxu0
        %v587 = vadd.f32 %v506, %v586
        %v588 = vpop.f32.mrb[0].mxu0
        %589 = vmatprep.mubr.f32.mxu0 0.0
        %590 = vmatmul.mubr.f32.gmra.mrb[0].mxu0 %v512
        %v591 = vpop.f32.mrb[0].mxu0
        %v592 = vadd.f32 %v506, %v591
        %v593 = vpop.f32.mrb[0].mxu0
        %594 = vmatprep.mubr.f32.mxu0 0.0
        %595 = vmatmul.mubr.f32.gmra.mrb[0].mxu0 %v515
        %v596 = vpop.f32.mrb[0].mxu0
        %v597 = vadd.f32 %v506, %v596
        %v598 = vpop.f32.mrb[0].mxu0
        %599 = vmatprep.mubr.f32.mxu0 0.0
        %600 = vmatmul.mubr.f32.gmra.mrb[0].mxu0 %v518
        %v601 = vpop.f32.mrb[0].mxu0
        %v602 = vadd.f32 %v506, %v601
        %v603 = vpop.f32.mrb[0].mxu0
        %604 = vdwg.mxu0
        %v605 = vmul.f32 %v587, 1.442695
        %v606 = vpow.pop %v605
        %v607 = vmul.f32 %v592, 1.442695
        %v608 = vpow.pop %v607
        %v609 = vmul.f32 %v597, 1.442695
        %v610 = vpow.pop %v609
        %v611 = vmul.f32 %v602, 1.442695
        %v612 = vpow.pop %v611
        %v613 = vld [vmem:[%s371] sm:$0xff]
        %v614 = vld [vmem:[%s371 + $0x8] sm:$0xff]
        %v615 = vld [vmem:[%s371 + $0x10] sm:$0xff]
        %v616 = vld [vmem:[%s371 + $0x18] sm:$0xff]
        %621 = vrot.lane.b32.xlu0 %v613, 10
        %v622 = vpop.permute.xlu0 %621
        %623 = vrot.lane.b32.xlu0 %v614, 10
        %v624 = vpop.permute.xlu0 %623
        %625 = vrot.lane.b32.xlu0 %v615, 10
        %v626 = vpop.permute.xlu0 %625
        %627 = vrot.lane.b32.xlu0 %v616, 10
        %v628 = vpop.permute.xlu0 %627
        %v633 = vmul.f32 %v606, %v622
        %v634 = vmul.f32 %v608, %v624
        %v635 = vmul.f32 %v610, %v626
        %v636 = vmul.f32 %v612, %v628
        %641 = vrot.lane.b32.xlu0 %v633, 118
        %v642 = vpop.permute.xlu0 %641
        %643 = vrot.lane.b32.xlu0 %v634, 118
        %v644 = vpop.permute.xlu0 %643
        %645 = vrot.lane.b32.xlu0 %v635, 118
        %v646 = vpop.permute.xlu0 %645
        %647 = vrot.lane.b32.xlu0 %v636, 118
        %v648 = vpop.permute.xlu0 %647
        %v653 = vadd.f32 %v587, %v642
        %v654 = vadd.f32 %v592, %v644
        %v655 = vadd.f32 %v597, %v646
        %v656 = vadd.f32 %v602, %v648
        %v657 = vld [vmem:[%s4] sm:$0xff]
        %v658 = vld [vmem:[%s4 + $0x8] sm:$0x3]
        %v659 = vlaneseq
        %v660 = vshrl.u32 %v659, 7
        %v661 = vsub.s32 0, %v660
        %v662 = vrot.slane %v383, %v661
        %vm663 = vcmask 80896
        %v665 = vsel %vm663, %v653, 0
        %v668 = vsel %vm663, %v654, 0
        %v671 = vsel %vm663, %v655, 0
        %v674 = vsel %vm663, %v656, 0
        %vm676 = vcmask 1041408
        %v678 = vsel %vm676, %v658, 0
        %680 = vmatprep.subr.mxu0 0.0
        %681 = vmatpush1.msra.mxu0 %v657
        %682 = vmatprep.subr.mxu0 0.0
        %683 = vmatpush1.msra.mxu0 %v678
        %684 = vmatprep.subr.mxu0 0.0
        %685 = vmatpush1.msra.mxu0 0.0
        %686 = vmatprep.subr.mxu0 0.0
        %687 = vmatpush1.msra.mxu0 0.0
        %688 = vmatprep.subr.mxu0 0.0
        %689 = vmatpush1.msra.mxu0 0.0
        %690 = vmatprep.subr.mxu0 0.0
        %691 = vmatpush1.msra.mxu0 0.0
        %692 = vmatprep.subr.mxu0 0.0
        %693 = vmatpush1.msra.mxu0 0.0
        %694 = vmatprep.subr.mxu0 0.0
        %695 = vmatpush1.msra.mxu0 0.0
        %696 = vmatprep.subr.mxu0 0.0
        %697 = vmatpush1.msra.mxu0 0.0
        %698 = vmatprep.subr.mxu0 0.0
        %699 = vmatpush1.msra.mxu0 0.0
        %700 = vmatprep.subr.mxu0 0.0
        %701 = vmatpush1.msra.mxu0 0.0
        %702 = vmatprep.subr.mxu0 0.0
        %703 = vmatpush1.msra.mxu0 0.0
        %704 = vmatprep.subr.mxu0 0.0
        %705 = vmatpush1.msra.mxu0 0.0
        %706 = vmatprep.subr.mxu0 0.0
        %707 = vmatpush1.msra.mxu0 0.0
        %708 = vmatprep.subr.mxu0 0.0
        %709 = vmatpush1.msra.mxu0 0.0
        %710 = vmatprep.subr.mxu0 0.0
        %711 = vmatpush1.msra.mxu0 0.0
        %712 = vmatprep.subr.mxu0 0.0
        %713 = vmatpush1.msra.mxu0 0.0
        %714 = vmatprep.subr.mxu0 0.0
        %715 = vmatpush1.msra.mxu0 0.0
        %716 = vmatprep.subr.mxu0 0.0
        %717 = vmatpush1.msra.mxu0 0.0
        %718 = vmatprep.subr.mxu0 0.0
        %719 = vmatpush1.msra.mxu0 0.0
        %720 = vmatprep.subr.mxu0 0.0
        %721 = vmatpush1.msra.mxu0 0.0
        %722 = vmatprep.subr.mxu0 0.0
        %723 = vmatpush1.msra.mxu0 0.0
        %724 = vmatprep.subr.mxu0 0.0
        %725 = vmatpush1.msra.mxu0 0.0
        %726 = vmatprep.subr.mxu0 0.0
        %727 = vmatpush1.msra.mxu0 0.0
        %728 = vmatprep.subr.mxu0 0.0
        %729 = vmatpush1.msra.mxu0 0.0
        %730 = vmatprep.subr.mxu0 0.0
        %731 = vmatpush1.msra.mxu0 0.0
        %732 = vmatprep.subr.mxu0 0.0
        %733 = vmatpush1.msra.mxu0 0.0
        %734 = vmatprep.subr.mxu0 0.0
        %735 = vmatpush1.msra.mxu0 0.0
        %736 = vmatprep.subr.mxu0 0.0
        %737 = vmatpush1.msra.mxu0 0.0
        %738 = vmatprep.subr.mxu0 0.0
        %739 = vmatpush1.msra.mxu0 0.0
        %740 = vmatprep.subr.mxu0 0.0
        %741 = vmatpush1.msra.mxu0 0.0
        %742 = vmatprep.subr.mxu0 0.0
        %743 = vmatpush1.msra.mxu0 0.0
        %744 = vmatprep.mubr.f32.mxu0 0.0
        %745 = vmatmul.mubr.f32.gmra.mrb[0].mxu0 %v665
        %v746 = vpop.f32.mrb[0].mxu0
        %v747 = vadd.f32 %v662, %v746
        %v748 = vpop.f32.mrb[0].mxu0
        %749 = vmatprep.mubr.f32.mxu0 0.0
        %750 = vmatmul.mubr.f32.gmra.mrb[0].mxu0 %v668
        %v751 = vpop.f32.mrb[0].mxu0
        %v752 = vadd.f32 %v662, %v751
        %v753 = vpop.f32.mrb[0].mxu0
        %754 = vmatprep.mubr.f32.mxu0 0.0
        %755 = vmatmul.mubr.f32.gmra.mrb[0].mxu0 %v671
        %v756 = vpop.f32.mrb[0].mxu0
        %v757 = vadd.f32 %v662, %v756
        %v758 = vpop.f32.mrb[0].mxu0
        %759 = vmatprep.mubr.f32.mxu0 0.0
        %760 = vmatmul.mubr.f32.gmra.mrb[0].mxu0 %v674
        %v761 = vpop.f32.mrb[0].mxu0
        %v762 = vadd.f32 %v662, %v761
        %v763 = vpop.f32.mrb[0].mxu0
        %764 = vdwg.mxu0
        %v765 = vtanh.pop %v747
        %v766 = vtanh.pop %v752
        %v767 = vtanh.pop %v757
        %v768 = vtanh.pop %v762
        %v769 = vld [vmem:[%s5] sm:$0xff]
        %v770 = vld [vmem:[%s5 + $0x8] sm:$0xff]
        %v771 = vld [vmem:[%s5 + $0x10] sm:$0xff]
        %v772 = vld [vmem:[%s5 + $0x18] sm:$0xff]
        %v773 = vld [vmem:[%s5 + $0x20] sm:$0xff]
        %v774 = vld [vmem:[%s5 + $0x28] sm:$0xff]
        %v775 = vld [vmem:[%s5 + $0x30] sm:$0xff]
        %v776 = vld [vmem:[%s5 + $0x38] sm:$0xff]
        %v778 = vlaneseq
        %v779 = vshrl.u32 %v778, 7
        %v780 = vsub.s32 0, %v779
        %v781 = vrot.slane %v385, %v780
        %v782 = vlaneseq
        %v783 = vshrl.u32 %v782, 7
        %v784 = vsub.s32 1, %v783
        %v785 = vrot.slane %v385, %v784
        %v789 = vsel %vm507, %v765, 0
        %v792 = vsel %vm507, %v766, 0
        %v795 = vsel %vm507, %v767, 0
        %v798 = vsel %vm507, %v768, 0
        %800 = vmatprep.subr.mxu0 %v770
        %801 = vmatpush1.msra.mxu0 %v769
        %802 = vmatprep.subr.mxu0 %v772
        %803 = vmatpush1.msra.mxu0 %v771
        %804 = vmatprep.subr.mxu0 %v774
        %805 = vmatpush1.msra.mxu0 %v773
        %806 = vmatprep.subr.mxu0 %v776
        %807 = vmatpush1.msra.mxu0 %v775
        %808 = vmatprep.subr.mxu0 0.0
        %809 = vmatpush1.msra.mxu0 0.0
        %810 = vmatprep.subr.mxu0 0.0
        %811 = vmatpush1.msra.mxu0 0.0
        %812 = vmatprep.subr.mxu0 0.0
        %813 = vmatpush1.msra.mxu0 0.0
        %814 = vmatprep.subr.mxu0 0.0
        %815 = vmatpush1.msra.mxu0 0.0
        %816 = vmatprep.subr.mxu0 0.0
        %817 = vmatpush1.msra.mxu0 0.0
        %818 = vmatprep.subr.mxu0 0.0
        %819 = vmatpush1.msra.mxu0 0.0
        %820 = vmatprep.subr.mxu0 0.0
        %821 = vmatpush1.msra.mxu0 0.0
        %822 = vmatprep.subr.mxu0 0.0
        %823 = vmatpush1.msra.mxu0 0.0
        %824 = vmatprep.subr.mxu0 0.0
        %825 = vmatpush1.msra.mxu0 0.0
        %826 = vmatprep.subr.mxu0 0.0
        %827 = vmatpush1.msra.mxu0 0.0
        %828 = vmatprep.subr.mxu0 0.0
        %829 = vmatpush1.msra.mxu0 0.0
        %830 = vmatprep.subr.mxu0 0.0
        %831 = vmatpush1.msra.mxu0 0.0
        %832 = vmatprep.subr.mxu0 0.0
        %833 = vmatpush1.msra.mxu0 0.0
        %834 = vmatprep.subr.mxu0 0.0
        %835 = vmatpush1.msra.mxu0 0.0
        %836 = vmatprep.subr.mxu0 0.0
        %837 = vmatpush1.msra.mxu0 0.0
        %838 = vmatprep.subr.mxu0 0.0
        %839 = vmatpush1.msra.mxu0 0.0
        %840 = vmatprep.subr.mxu0 0.0
        %841 = vmatpush1.msra.mxu0 0.0
        %842 = vmatprep.subr.mxu0 0.0
        %843 = vmatpush1.msra.mxu0 0.0
        %844 = vmatprep.subr.mxu0 0.0
        %845 = vmatpush1.msra.mxu0 0.0
        %846 = vmatprep.subr.mxu0 0.0
        %847 = vmatpush1.msra.mxu0 0.0
        %848 = vmatprep.subr.mxu0 0.0
        %849 = vmatpush1.msra.mxu0 0.0
        %850 = vmatprep.subr.mxu0 0.0
        %851 = vmatpush1.msra.mxu0 0.0
        %852 = vmatprep.subr.mxu0 0.0
        %853 = vmatpush1.msra.mxu0 0.0
        %854 = vmatprep.subr.mxu0 0.0
        %855 = vmatpush1.msra.mxu0 0.0
        %856 = vmatprep.subr.mxu0 0.0
        %857 = vmatpush1.msra.mxu0 0.0
        %858 = vmatprep.subr.mxu0 0.0
        %859 = vmatpush1.msra.mxu0 0.0
        %860 = vmatprep.subr.mxu0 0.0
        %861 = vmatpush1.msra.mxu0 0.0
        %862 = vmatprep.subr.mxu0 0.0
        %863 = vmatpush1.msra.mxu0 0.0
        %864 = vmatprep.mubr.f32.mxu0 0.0
        %865 = vmatmul.mubr.f32.gmra.mrb[0].mxu0 %v789
        %v866 = vpop.f32.mrb[0].mxu0
        %v867 = vadd.f32 %v781, %v866
        %v868 = vpop.f32.mrb[0].mxu0
        %v869 = vadd.f32 %v785, %v868
        %870 = vmatprep.mubr.f32.mxu0 0.0
        %871 = vmatmul.mubr.f32.gmra.mrb[0].mxu0 %v792
        %v872 = vpop.f32.mrb[0].mxu0
        %v873 = vadd.f32 %v781, %v872
        %v874 = vpop.f32.mrb[0].mxu0
        %v875 = vadd.f32 %v785, %v874
        %876 = vmatprep.mubr.f32.mxu0 0.0
        %877 = vmatmul.mubr.f32.gmra.mrb[0].mxu0 %v795
        %v878 = vpop.f32.mrb[0].mxu0
        %v879 = vadd.f32 %v781, %v878
        %v880 = vpop.f32.mrb[0].mxu0
        %v881 = vadd.f32 %v785, %v880
        %882 = vmatprep.mubr.f32.mxu0 0.0
        %883 = vmatmul.mubr.f32.gmra.mrb[0].mxu0 %v798
        %v884 = vpop.f32.mrb[0].mxu0
        %v885 = vadd.f32 %v781, %v884
        %v886 = vpop.f32.mrb[0].mxu0
        %v887 = vadd.f32 %v785, %v886
        %888 = vdwg.mxu0
        %v889 = vxor.u32 %v867, 2147483648
        %v890 = vxor.u32 %v873, 2147483648
        %v891 = vxor.u32 %v879, 2147483648
        %v892 = vxor.u32 %v885, 2147483648
        %v893 = vmul.f32 %v889, 1.442695
        %v894 = vpow.pop %v893
        %v895 = vmul.f32 %v890, 1.442695
        %v896 = vpow.pop %v895
        %v897 = vmul.f32 %v891, 1.442695
        %v898 = vpow.pop %v897
        %v899 = vmul.f32 %v892, 1.442695
        %v900 = vpow.pop %v899
        %v901 = vadd.f32 %v894, 1.0
        %v902 = vadd.f32 %v896, 1.0
        %v903 = vadd.f32 %v898, 1.0
        %v904 = vadd.f32 %v900, 1.0
        %v905 = vrcp.pop %v901
        %v906 = vmul.f32 1.0, %v905
        %v907 = vrcp.pop %v902
        %v908 = vmul.f32 1.0, %v907
        %v909 = vrcp.pop %v903
        %v910 = vmul.f32 1.0, %v909
        %v911 = vrcp.pop %v904
        %v912 = vmul.f32 1.0, %v911
        %913 = vst [vmem:[%s346] sm:$0xff] %v906
        %914 = vst [vmem:[%s346 + $0x8] sm:$0xff] %v908
        %915 = vst [vmem:[%s346 + $0x10] sm:$0xff] %v910
        %916 = vst [vmem:[%s346 + $0x18] sm:$0xff] %v912
        %917 = vst [vmem:[%s353] sm:$0xff] %v869
        %918 = vst [vmem:[%s353 + $0x8] sm:$0xff] %v875
        %919 = vst [vmem:[%s353 + $0x10] sm:$0xff] %v881
        %920 = vst [vmem:[%s353 + $0x18] sm:$0xff] %v887
        %vm921 = vcmask 162816
        %922 = vst.msk [vmem:[%s379] sm:$0xff] %vm921, %v587
        %923 = vst.msk [vmem:[%s379 + $0x8] sm:$0xff] %vm921, %v592
        %924 = vst.msk [vmem:[%s379 + $0x10] sm:$0xff] %vm921, %v597
        %925 = vst.msk [vmem:[%s379 + $0x18] sm:$0xff] %vm921, %v602
        %s926 = sand.u32 %s192, 1
        %s927 = scalar_lea.sflag [#allocation3], %s926
        %s928 = sand.u32 %s192, 1
        %s929 = smul.addr %s928, 32
        %s930 = scalar_lea.vmem [#allocation2], %s929
        %s931 = sand.u32 %s218, 1
        %s932 = scalar_lea.sflag [#allocation5], %s931
        %s933 = sand.u32 %s218, 1
        %s934 = smul.addr %s933, 32
        %s935 = scalar_lea.vmem [#allocation4], %s934
        %s936 = smul.u32 4, %s27
        %p937 = scmp.lt.s32.totalorder %s936, 7
        %s938 = scalar_select %p937, %s936, 7
        %s939 = smul.addr %s938, 8
        %s940 = scalar_lea.vmem %s9, %s939
        // Predicated region
        $region49: #{vae_forward.1} parent=47 // pred_check
          %p941 = pneg %p202
        $region50: #{vae_forward.1} parent=47 // pred_check_branch
          %943 = sbr.rel (%p941) target = $region52
        $region51: #{vae_forward.1} parent=47 // pred_region
          %s944 = smul.u32 4, %s27
          %s946 = ssub.s32 512, 512
          %947 = vsyncadd %s927, %s946
          %s948 = smul.addr %s944, 128
          %s949 = scalar_lea.hbm %s7, %s948
          %s950 = sshll.u32 %s930, 4
          %s951 = int_to_ptr.vmem [resolvable:$true] %s950
          %956 = dma.vmem_to_hbm [thread:$0]  %s951, 512, %s949, %s927, 128, 128, 8
        $region52: #{vae_forward.1} parent=47 // pred_fallthru
          _
        // Predicated region
        $region53: #{vae_forward.1} parent=47 // pred_check
          %p957 = pneg %p228
        $region54: #{vae_forward.1} parent=47 // pred_check_branch
          %959 = sbr.rel (%p957) target = $region56
        $region55: #{vae_forward.1} parent=47 // pred_region
          %s960 = smul.u32 4, %s27
          %s962 = ssub.s32 512, 512
          %963 = vsyncadd %s932, %s962
          %s964 = smul.addr %s960, 128
          %s965 = scalar_lea.hbm %s8, %s964
          %s966 = sshll.u32 %s935, 4
          %s967 = int_to_ptr.vmem [resolvable:$true] %s966
          %972 = dma.vmem_to_hbm [thread:$0]  %s967, 512, %s965, %s932, 128, 128, 8
        $region56: #{vae_forward.1} parent=47 // pred_fallthru
          _
        // Predicated region
        $region57: #{vae_forward.1} parent=47 // pred_check
          %p973 = pneg %p254
        $region58: #{vae_forward.1} parent=47 // pred_check_branch
          %975 = sbr.rel (%p973) target = $region60
        $region59: #{vae_forward.1} parent=47 // pred_region
          %s976 = smul.u32 4, %s27
        $region60: #{vae_forward.1} parent=47 // pred_fallthru
          _
      $region48: #{vae_forward.1} parent=5 // pred_fallthru
        _
      %p977 = scmp.le.s32.totalorder 2, %s22
      // Predicated region
      $region61: #{vae_forward.1} parent=5 // pred_check
        %p978 = pneg %p977
      $region62: #{vae_forward.1} parent=5 // pred_check_branch
        %980 = sbr.rel (%p978) target = $region64
      $region63: #{vae_forward.1} parent=5 // pred_region
        %s981 = ssub.s32 %s22, 2
        // Predicated region
        $region65: #{vae_forward.1} parent=63 // pred_check
          %p982 = pneg %p208
        $region66: #{vae_forward.1} parent=63 // pred_check_branch
          %984 = sbr.rel (%p982) target = $region68
        $region67: #{vae_forward.1} parent=63 // pred_region
          %s985 = sand.u32 %s193, 1
          %s986 = scalar_lea.sflag [#allocation3], %s985
          %s987 = sand.u32 %s193, 1
          %s988 = smul.addr %s987, 32
          %s989 = scalar_lea.vmem [#allocation2], %s988
          %990 = dma.done %s986, 512
        $region68: #{vae_forward.1} parent=63 // pred_fallthru
          _
        // Predicated region
        $region69: #{vae_forward.1} parent=63 // pred_check
          %p991 = pneg %p234
        $region70: #{vae_forward.1} parent=63 // pred_check_branch
          %993 = sbr.rel (%p991) target = $region72
        $region71: #{vae_forward.1} parent=63 // pred_region
          %s994 = sand.u32 %s219, 1
          %s995 = scalar_lea.sflag [#allocation5], %s994
          %s996 = sand.u32 %s219, 1
          %s997 = smul.addr %s996, 32
          %s998 = scalar_lea.vmem [#allocation4], %s997
          %999 = dma.done %s995, 512
        $region72: #{vae_forward.1} parent=63 // pred_fallthru
          _
        // Predicated region
        $region73: #{vae_forward.1} parent=63 // pred_check
          %p1000 = pneg %p260
        $region74: #{vae_forward.1} parent=63 // pred_check_branch
          %1002 = sbr.rel (%p1000) target = $region76
        $region75: #{vae_forward.1} parent=63 // pred_region
          %s1003 = smul.u32 4, %s28
          %p1004 = scmp.lt.s32.totalorder %s1003, 7
          %s1005 = scalar_select %p1004, %s1003, 7
          %s1006 = smul.addr %s1005, 8
          %s1007 = scalar_lea.vmem %s9, %s1006
        $region76: #{vae_forward.1} parent=63 // pred_fallthru
          _
      $region64: #{vae_forward.1} parent=5 // pred_fallthru
        _
    $region6: #{vae_forward.1} parent=1 // loop_footer
      %s26 = sadd.s32 1, %s22
    $region7: #{vae_forward.1} parent=1 // loop_footer_branch
      %21 = sbr.rel target = $region3
    $region8: #{vae_forward.1} parent=1 // loop_exit
      _
    %1008 = vsyncpa [#allocation3], 1
    %s1009 = scalar_lea.sflag [#allocation3], 1
    %1010 = vsyncpa %s1009, 1
    %1011 = vsyncpa [#allocation5], 1
    %s1012 = scalar_lea.sflag [#allocation5], 1
    %1013 = vsyncpa %s1012, 1

</llo_original>
